<compile_context>
chip_gen: v7x
topology: tpu7x:2x2x1
jax: 0.10.0
libtpu: 0.0.40
codegen_flags: <defaults>
</compile_context>

<pallas_src>
import functools

import jax
import jax.numpy as jnp
from jax.experimental import pallas as pl
from jax.experimental.pallas import tpu as pltpu

LANE = 128


def _round_up(x, m):
    return (x + m - 1) // m * m


def rnn_cell_encoder_kernel(x_ref, wih_t_ref, whh_t_ref, bias_ref, o_ref,
                            *, seq_len):
    """Whole RNNCell_Encoder forward in one invocation.

    x_ref     : (S*B, Dp) all timesteps, seq-major, zero-padded on D, in VMEM
    wih_t_ref : (Dp, Hp)  W_ih transposed, zero-padded
    whh_t_ref : (Hp, Hp)  W_hh transposed, zero-padded
    bias_ref  : (1, Hp)   b_ih + b_hh, zero-padded
    o_ref     : (B, Hp)   final hidden state (lane-dense; wrapper slices [:H])
    """
    B = o_ref.shape[0]
    Hp = o_ref.shape[1]

    x = x_ref[...]            # (S*B, Dp)
    wih_t = wih_t_ref[...]    # (Dp, Hp)
    whh_t = whh_t_ref[...]    # (Hp, Hp)
    bias = bias_ref[...]      # (1, Hp)

    # Hoisted input projection: one big MXU call, biases folded in.  Padded
    # lanes of wih_t / bias are zero, so padded lanes of xw are exactly zero.
    xw = jnp.dot(x, wih_t, preferred_element_type=jnp.float32) + bias  # (S*B, Hp)

    def step(h, xw_t):
        # Only the h @ W_hh^T matmul is on the serial critical path.
        return jnp.tanh(
            xw_t + jnp.dot(h, whh_t, preferred_element_type=jnp.float32))

    h0 = jnp.zeros((B, Hp), jnp.float32)

    if seq_len <= 16:
        # Small S: full unroll (static slices, max LLO scheduling visibility).
        h = h0
        for t in range(seq_len):
            h = step(h, xw[t * B:(t + 1) * B, :])
    else:
        # Larger S: bounded unroll so vreg live ranges stay bounded.
        def body(t, h):
            xw_t = jax.lax.dynamic_slice_in_dim(xw, t * B, B, axis=0)
            return step(h, xw_t)
        h = jax.lax.fori_loop(0, seq_len, body, h0, unroll=4)

    # Lane-dense (B, Hp) store -> unmasked vst.
    o_ref[...] = h.astype(o_ref.dtype)


def rnn_cell_encoder(inputs, w_ih, w_hh, b_ih, b_hh):
    """inputs: (S, B, D); w_ih: (H, D); w_hh: (H, H); b_ih, b_hh: (H,)."""
    S, B, D = inputs.shape
    H = w_ih.shape[0]
    # The PyTorch module zero-inits h with inputs.shape[0] rows, so it is only
    # shape-consistent when seq_len == per-step batch.  Preserve that quirk.
    assert S == B, "RNNCell_Encoder requires inputs.shape[0] == per-step batch"

    Dp = _round_up(D, LANE)
    Hp = _round_up(H, LANE)

    # Seq-major rows, zero-padded on the feature (lane) axis.
    x2d = jnp.asarray(inputs, jnp.float32).reshape(S * B, D)
    x2d = jnp.pad(x2d, ((0, 0), (0, Dp - D)))                          # (S*B, Dp)

    # Zero-padded weights / bias: padded rows/cols MUST be exactly zero so
    # padded h lanes stay 0 through the recurrence.
    wih_t = jnp.zeros((Dp, Hp), jnp.float32).at[:D, :H].set(
        jnp.asarray(w_ih, jnp.float32).T)                              # (Dp, Hp)
    whh_t = jnp.zeros((Hp, Hp), jnp.float32).at[:H, :H].set(
        jnp.asarray(w_hh, jnp.float32).T)                              # (Hp, Hp)
    bias = jnp.zeros((1, Hp), jnp.float32).at[0, :H].set(
        jnp.asarray(b_ih, jnp.float32) + jnp.asarray(b_hh, jnp.float32))

    vmem = pl.BlockSpec(memory_space=pltpu.MemorySpace.VMEM)
    out_padded = pl.pallas_call(
        functools.partial(rnn_cell_encoder_kernel, seq_len=S),
        out_shape=jax.ShapeDtypeStruct((B, Hp), jnp.float32),
        in_specs=[vmem, vmem, vmem, vmem],
        out_specs=vmem,
        compiler_params=pltpu.CompilerParams(vmem_limit_bytes=64 << 20),
    )(x2d, wih_t, whh_t, bias)
    return out_padded[:, :H]


def rnn_cell_encoder_ref(inputs, w_ih, w_hh, b_ih, b_hh):
    """Pure-JAX reference matching nn.RNNCell (tanh) unrolled over dim 0."""
    S, B, D = inputs.shape
    H = w_ih.shape[0]

    def step(h, x):
        h_new = jnp.tanh(x @ w_ih.T + b_ih + h @ w_hh.T + b_hh)
        return h_new, None

    h0 = jnp.zeros((B, H), jnp.float32)
    h_final, _ = jax.lax.scan(step, h0, inputs.astype(jnp.float32))
    return h_final


if __name__ == "__main__":
    # Module config (synthetic): input_dim=16, hidden_size=32, bias=True,
    # nonlinearity='tanh'.  seq == batch == 8 (required by the module's own
    # use of inputs.shape[0] for the zero hidden state).
    S, B, D, H = 8, 8, 16, 32

    key = jax.random.PRNGKey(0)
    k_x, k_wih, k_whh, k_bih, k_bhh = jax.random.split(key, 5)

    bound = 1.0 / jnp.sqrt(H)
    inputs = jax.random.normal(k_x, (S, B, D), jnp.float32)
    w_ih = jax.random.uniform(k_wih, (H, D), jnp.float32, -bound, bound)
    w_hh = jax.random.uniform(k_whh, (H, H), jnp.float32, -bound, bound)
    b_ih = jax.random.uniform(k_bih, (H,), jnp.float32, -bound, bound)
    b_hh = jax.random.uniform(k_bhh, (H,), jnp.float32, -bound, bound)

    out = rnn_cell_encoder(inputs, w_ih, w_hh, b_ih, b_hh)
    out = jax.block_until_ready(out)

    ref = rnn_cell_encoder_ref(inputs, w_ih, w_hh, b_ih, b_hh)
    assert out.shape == (B, H)
    assert jnp.allclose(out, ref, atol=1e-5, rtol=1e-5), "mismatch vs reference"

    print("KERNEL_OK")
</pallas_src>

<mosaic_0001>
module attributes {stable_mosaic.version = 11 : i64} {
  func.func @rnn_cell_encoder_kernel(%arg0: memref<64x128xf32, #tpu.memory_space<vmem>>, %arg1: memref<128x128xf32, #tpu.memory_space<vmem>>, %arg2: memref<128x128xf32, #tpu.memory_space<vmem>>, %arg3: memref<1x128xf32, #tpu.memory_space<vmem>>, %arg4: memref<8x128xf32, #tpu.memory_space<vmem>>) attributes {dimension_semantics = [], scalar_prefetch = 0 : i64, scratch_operands = 0 : i64, tpu.core_type = #tpu.core_type<tc>} {
    %c0 = arith.constant 0 : index
    %c0_0 = arith.constant 0 : index
    %0 = vector.load %arg0[%c0, %c0_0] : memref<64x128xf32, #tpu.memory_space<vmem>>, vector<64x128xf32>
    %c0_1 = arith.constant 0 : index
    %c0_2 = arith.constant 0 : index
    %1 = vector.load %arg1[%c0_1, %c0_2] : memref<128x128xf32, #tpu.memory_space<vmem>>, vector<128x128xf32>
    %c0_3 = arith.constant 0 : index
    %c0_4 = arith.constant 0 : index
    %2 = vector.load %arg2[%c0_3, %c0_4] : memref<128x128xf32, #tpu.memory_space<vmem>>, vector<128x128xf32>
    %c0_5 = arith.constant 0 : index
    %c0_6 = arith.constant 0 : index
    %3 = vector.load %arg3[%c0_5, %c0_6] : memref<1x128xf32, #tpu.memory_space<vmem>>, vector<1x128xf32>
    %cst = arith.constant dense<0.000000e+00> : vector<64x128xf32>
    %4 = tpu.matmul %0, %1, %cst {dimension_numbers = #tpu.dot_dimension_numbers<[1], [0], [0], [1], [0, 0, 1, 1], [], []>} : vector<64x128xf32>, vector<128x128xf32>, vector<64x128xf32> -> vector<64x128xf32>
    %5 = vector.broadcast %3 : vector<1x128xf32> to vector<64x128xf32>
    %6 = arith.addf %4, %5 : vector<64x128xf32>
    %cst_7 = arith.constant 0.000000e+00 : f32
    %7 = vector.broadcast %cst_7 : f32 to vector<8x128xf32>
    %8 = vector.extract_strided_slice %6 {offsets = [0, 0], sizes = [8, 128], strides = [1, 1]} : vector<64x128xf32> to vector<8x128xf32>
    %cst_8 = arith.constant dense<0.000000e+00> : vector<8x128xf32>
    %9 = tpu.matmul %7, %2, %cst_8 {dimension_numbers = #tpu.dot_dimension_numbers<[1], [0], [0], [1], [0, 0, 1, 1], [], []>} : vector<8x128xf32>, vector<128x128xf32>, vector<8x128xf32> -> vector<8x128xf32>
    %10 = arith.addf %8, %9 : vector<8x128xf32>
    %11 = math.tanh %10 : vector<8x128xf32>
    %12 = vector.extract_strided_slice %6 {offsets = [8, 0], sizes = [8, 128], strides = [1, 1]} : vector<64x128xf32> to vector<8x128xf32>
    %cst_9 = arith.constant dense<0.000000e+00> : vector<8x128xf32>
    %13 = tpu.matmul %11, %2, %cst_9 {dimension_numbers = #tpu.dot_dimension_numbers<[1], [0], [0], [1], [0, 0, 1, 1], [], []>} : vector<8x128xf32>, vector<128x128xf32>, vector<8x128xf32> -> vector<8x128xf32>
    %14 = arith.addf %12, %13 : vector<8x128xf32>
    %15 = math.tanh %14 : vector<8x128xf32>
    %16 = vector.extract_strided_slice %6 {offsets = [16, 0], sizes = [8, 128], strides = [1, 1]} : vector<64x128xf32> to vector<8x128xf32>
    %cst_10 = arith.constant dense<0.000000e+00> : vector<8x128xf32>
    %17 = tpu.matmul %15, %2, %cst_10 {dimension_numbers = #tpu.dot_dimension_numbers<[1], [0], [0], [1], [0, 0, 1, 1], [], []>} : vector<8x128xf32>, vector<128x128xf32>, vector<8x128xf32> -> vector<8x128xf32>
    %18 = arith.addf %16, %17 : vector<8x128xf32>
    %19 = math.tanh %18 : vector<8x128xf32>
    %20 = vector.extract_strided_slice %6 {offsets = [24, 0], sizes = [8, 128], strides = [1, 1]} : vector<64x128xf32> to vector<8x128xf32>
    %cst_11 = arith.constant dense<0.000000e+00> : vector<8x128xf32>
    %21 = tpu.matmul %19, %2, %cst_11 {dimension_numbers = #tpu.dot_dimension_numbers<[1], [0], [0], [1], [0, 0, 1, 1], [], []>} : vector<8x128xf32>, vector<128x128xf32>, vector<8x128xf32> -> vector<8x128xf32>
    %22 = arith.addf %20, %21 : vector<8x128xf32>
    %23 = math.tanh %22 : vector<8x128xf32>
    %24 = vector.extract_strided_slice %6 {offsets = [32, 0], sizes = [8, 128], strides = [1, 1]} : vector<64x128xf32> to vector<8x128xf32>
    %cst_12 = arith.constant dense<0.000000e+00> : vector<8x128xf32>
    %25 = tpu.matmul %23, %2, %cst_12 {dimension_numbers = #tpu.dot_dimension_numbers<[1], [0], [0], [1], [0, 0, 1, 1], [], []>} : vector<8x128xf32>, vector<128x128xf32>, vector<8x128xf32> -> vector<8x128xf32>
    %26 = arith.addf %24, %25 : vector<8x128xf32>
    %27 = math.tanh %26 : vector<8x128xf32>
    %28 = vector.extract_strided_slice %6 {offsets = [40, 0], sizes = [8, 128], strides = [1, 1]} : vector<64x128xf32> to vector<8x128xf32>
    %cst_13 = arith.constant dense<0.000000e+00> : vector<8x128xf32>
    %29 = tpu.matmul %27, %2, %cst_13 {dimension_numbers = #tpu.dot_dimension_numbers<[1], [0], [0], [1], [0, 0, 1, 1], [], []>} : vector<8x128xf32>, vector<128x128xf32>, vector<8x128xf32> -> vector<8x128xf32>
    %30 = arith.addf %28, %29 : vector<8x128xf32>
    %31 = math.tanh %30 : vector<8x128xf32>
    %32 = vector.extract_strided_slice %6 {offsets = [48, 0], sizes = [8, 128], strides = [1, 1]} : vector<64x128xf32> to vector<8x128xf32>
    %cst_14 = arith.constant dense<0.000000e+00> : vector<8x128xf32>
    %33 = tpu.matmul %31, %2, %cst_14 {dimension_numbers = #tpu.dot_dimension_numbers<[1], [0], [0], [1], [0, 0, 1, 1], [], []>} : vector<8x128xf32>, vector<128x128xf32>, vector<8x128xf32> -> vector<8x128xf32>
    %34 = arith.addf %32, %33 : vector<8x128xf32>
    %35 = math.tanh %34 : vector<8x128xf32>
    %36 = vector.extract_strided_slice %6 {offsets = [56, 0], sizes = [8, 128], strides = [1, 1]} : vector<64x128xf32> to vector<8x128xf32>
    %cst_15 = arith.constant dense<0.000000e+00> : vector<8x128xf32>
    %37 = tpu.matmul %35, %2, %cst_15 {dimension_numbers = #tpu.dot_dimension_numbers<[1], [0], [0], [1], [0, 0, 1, 1], [], []>} : vector<8x128xf32>, vector<128x128xf32>, vector<8x128xf32> -> vector<8x128xf32>
    %38 = arith.addf %36, %37 : vector<8x128xf32>
    %39 = math.tanh %38 : vector<8x128xf32>
    %c0_16 = arith.constant 0 : index
    %c0_17 = arith.constant 0 : index
    %40 = vector.load %arg4[%c0_16, %c0_17] : memref<8x128xf32, #tpu.memory_space<vmem>>, vector<8x128xf32>
    tpu.vector_store %arg4[%c0_16, %c0_17], %39 {strides = array<i32>} : memref<8x128xf32, #tpu.memory_space<vmem>>, vector<8x128xf32>,
    return
  }
}

</mosaic_0001>

<llo_original>
// kernel: tpu_custom_call.1
$region0: #{tpu_custom_call.1}
  #allocation0 [shape = 'u32[]', space=smem, size = 0x4, offset = 0x4, fixed_abs, tag = 'smem constant byte address 0x4 - core index']
  #allocation1 [shape = 'u32[144,128]{1,0:T(1,128)}', space=vmem, size = 0x12000, scoped, tag = 'internal scratch']
  %s0 = inlined_call_operand.hbm [shape: f32[64,128], index: 0, kind: input, shape index: {}]
  %s1 = inlined_call_operand.hbm [shape: f32[128,128], index: 1, kind: input, shape index: {}]
  %s2 = inlined_call_operand.hbm [shape: f32[128,128], index: 2, kind: input, shape index: {}]
  %s3 = inlined_call_operand.hbm [shape: f32[1,128], index: 3, kind: input, shape index: {}]
  %s4 = inlined_call_operand.hbm [shape: f32[8,128], index: 4, kind: output, shape index: {}]
  %s5 = sld [smem:[#allocation0]]
  $region42: #{tpu_custom_call.1} parent=0
    _
  %s7 = ssub.s32 1, %s5
  %s8 = scalar_select 0, %s7, %s5
  $region1: #{tpu_custom_call.1} parent=0
    #allocation2 [shape = 'u8[32768]{0}', space=vmem, size = 0x8000, scoped, tag = 'input window, operand 0, single buffered']
    #allocation3 [shape = 's32[1]{0}', space=sflag, size = 0x4, scoped, tag = 'scoped memory for tpu_custom_call.1']
    #allocation4 [shape = 's32[1]{0}', space=sflag, size = 0x4, scoped, tag = 'scoped memory for tpu_custom_call.1']
    #allocation5 [shape = 'u8[65536]{0}', space=vmem, size = 0x10000, scoped, tag = 'input window, operand 1, single buffered']
    #allocation6 [shape = 's32[1]{0}', space=sflag, size = 0x4, scoped, tag = 'scoped memory for tpu_custom_call.1']
    #allocation7 [shape = 'u8[65536]{0}', space=vmem, size = 0x10000, scoped, tag = 'input window, operand 2, single buffered']
    #allocation8 [shape = 'u8[512]{0}', space=vmem, size = 0x400, scoped, tag = 'input window, operand 3, single buffered']
    #allocation9 [shape = 's32[1]{0}', space=sflag, size = 0x4, scoped, tag = 'scoped memory for tpu_custom_call.1']
    #allocation10 [shape = 'u8[4096]{0}', space=vmem, size = 0x1000, scoped, tag = 'output window, operand 0, single buffered']
    %9 = vsyncpa [#allocation3], 0
    %10 = vsyncpa [#allocation6], 0
    %11 = vsyncpa [#allocation9], 0
    %12 = vsyncpa [#allocation4], 0
    // Predicated region
    $region2: #{tpu_custom_call.1} parent=1 // pred_check
      _
    $region3: #{tpu_custom_call.1} parent=1 // pred_check_branch
      %14 = sbr.rel (0) target = $region5
    $region4: #{tpu_custom_call.1} parent=1 // pred_region
      %s16 = ssub.s32 1024, 1024
      %17 = vsyncadd [#allocation3], %s16
      %s18 = sshll.u32 [#allocation2], 4
      %s19 = int_to_ptr.vmem [resolvable:$true] %s18
      %24 = dma.hbm_to_vmem [thread:$0]  %s0, 1024, %s19, [#allocation3], 128, 128, 8
    $region5: #{tpu_custom_call.1} parent=1 // pred_fallthru
      _
    // Predicated region
    $region6: #{tpu_custom_call.1} parent=1 // pred_check
      _
    $region7: #{tpu_custom_call.1} parent=1 // pred_check_branch
      %26 = sbr.rel (0) target = $region9
    $region8: #{tpu_custom_call.1} parent=1 // pred_region
      %s28 = ssub.s32 2048, 2048
      %29 = vsyncadd [#allocation6], %s28
      %s30 = sshll.u32 [#allocation5], 4
      %s31 = int_to_ptr.vmem [resolvable:$true] %s30
      %36 = dma.hbm_to_vmem [thread:$0]  %s1, 2048, %s31, [#allocation6], 128, 128, 8
    $region9: #{tpu_custom_call.1} parent=1 // pred_fallthru
      _
    // Predicated region
    $region10: #{tpu_custom_call.1} parent=1 // pred_check
      _
    $region11: #{tpu_custom_call.1} parent=1 // pred_check_branch
      %38 = sbr.rel (0) target = $region13
    $region12: #{tpu_custom_call.1} parent=1 // pred_region
      %s40 = ssub.s32 2048, 2048
      %41 = vsyncadd [#allocation6], %s40
      %s42 = sshll.u32 [#allocation7], 4
      %s43 = int_to_ptr.vmem [resolvable:$true] %s42
      %48 = dma.hbm_to_vmem [thread:$0]  %s2, 2048, %s43, [#allocation6], 128, 128, 8
    $region13: #{tpu_custom_call.1} parent=1 // pred_fallthru
      _
    // Predicated region
    $region14: #{tpu_custom_call.1} parent=1 // pred_check
      _
    $region15: #{tpu_custom_call.1} parent=1 // pred_check_branch
      %50 = sbr.rel (0) target = $region17
    $region16: #{tpu_custom_call.1} parent=1 // pred_region
      %s52 = ssub.s32 16, 16
      %53 = vsyncadd [#allocation9], %s52
      %s55 = sshll.u32 [#allocation8], 4
      %s56 = int_to_ptr.vmem [resolvable:$true] %s55
      %58 = dma.hbm_to_vmem [thread:$0]  %s3, 16, %s56, [#allocation9]
    $region17: #{tpu_custom_call.1} parent=1 // pred_fallthru
      _
    // Predicated region
    $region18: #{tpu_custom_call.1} parent=1 // pred_check
      _
    $region19: #{tpu_custom_call.1} parent=1 // pred_check_branch
      %60 = sbr.rel (0) target = $region21
    $region20: #{tpu_custom_call.1} parent=1 // pred_region
      %61 = dma.done [#allocation3], 1024
    $region21: #{tpu_custom_call.1} parent=1 // pred_fallthru
      _
    // Predicated region
    $region22: #{tpu_custom_call.1} parent=1 // pred_check
      _
    $region23: #{tpu_custom_call.1} parent=1 // pred_check_branch
      %63 = sbr.rel (0) target = $region25
    $region24: #{tpu_custom_call.1} parent=1 // pred_region
      %64 = dma.done [#allocation6], 2048
    $region25: #{tpu_custom_call.1} parent=1 // pred_fallthru
      _
    // Predicated region
    $region26: #{tpu_custom_call.1} parent=1 // pred_check
      _
    $region27: #{tpu_custom_call.1} parent=1 // pred_check_branch
      %66 = sbr.rel (0) target = $region29
    $region28: #{tpu_custom_call.1} parent=1 // pred_region
      %67 = dma.done [#allocation6], 2048
    $region29: #{tpu_custom_call.1} parent=1 // pred_fallthru
      _
    // Predicated region
    $region30: #{tpu_custom_call.1} parent=1 // pred_check
      _
    $region31: #{tpu_custom_call.1} parent=1 // pred_check_branch
      %69 = sbr.rel (0) target = $region33
    $region32: #{tpu_custom_call.1} parent=1 // pred_region
      %70 = dma.done [#allocation9], 16
    $region33: #{tpu_custom_call.1} parent=1 // pred_fallthru
      _
    %v71 = vld [vmem:[#allocation2] sm:$0xff]
    %v72 = vld [vmem:[#allocation2 + $0x8] sm:$0xff]
    %v73 = vld [vmem:[#allocation2 + $0x10] sm:$0xff]
    %v74 = vld [vmem:[#allocation2 + $0x18] sm:$0xff]
    %v75 = vld [vmem:[#allocation2 + $0x20] sm:$0xff]
    %v76 = vld [vmem:[#allocation2 + $0x28] sm:$0xff]
    %v77 = vld [vmem:[#allocation2 + $0x30] sm:$0xff]
    %v78 = vld [vmem:[#allocation2 + $0x38] sm:$0xff]
    %v79 = vld [vmem:[#allocation5] sm:$0xff]
    %v80 = vld [vmem:[#allocation5 + $0x8] sm:$0xff]
    %v81 = vld [vmem:[#allocation5 + $0x10] sm:$0xff]
    %v82 = vld [vmem:[#allocation5 + $0x18] sm:$0xff]
    %v83 = vld [vmem:[#allocation5 + $0x20] sm:$0xff]
    %v84 = vld [vmem:[#allocation5 + $0x28] sm:$0xff]
    %v85 = vld [vmem:[#allocation5 + $0x30] sm:$0xff]
    %v86 = vld [vmem:[#allocation5 + $0x38] sm:$0xff]
    %v87 = vld [vmem:[#allocation5 + $0x40] sm:$0xff]
    %v88 = vld [vmem:[#allocation5 + $0x48] sm:$0xff]
    %v89 = vld [vmem:[#allocation5 + $0x50] sm:$0xff]
    %v90 = vld [vmem:[#allocation5 + $0x58] sm:$0xff]
    %v91 = vld [vmem:[#allocation5 + $0x60] sm:$0xff]
    %v92 = vld [vmem:[#allocation5 + $0x68] sm:$0xff]
    %v93 = vld [vmem:[#allocation5 + $0x70] sm:$0xff]
    %v94 = vld [vmem:[#allocation5 + $0x78] sm:$0xff]
    %v95 = vld [vmem:[#allocation7] sm:$0xff]
    %v96 = vld [vmem:[#allocation7 + $0x8] sm:$0xff]
    %v97 = vld [vmem:[#allocation7 + $0x10] sm:$0xff]
    %v98 = vld [vmem:[#allocation7 + $0x18] sm:$0xff]
    %v99 = vld [vmem:[#allocation7 + $0x20] sm:$0xff]
    %v100 = vld [vmem:[#allocation7 + $0x28] sm:$0xff]
    %v101 = vld [vmem:[#allocation7 + $0x30] sm:$0xff]
    %v102 = vld [vmem:[#allocation7 + $0x38] sm:$0xff]
    %v103 = vld [vmem:[#allocation7 + $0x40] sm:$0xff]
    %v104 = vld [vmem:[#allocation7 + $0x48] sm:$0xff]
    %v105 = vld [vmem:[#allocation7 + $0x50] sm:$0xff]
    %v106 = vld [vmem:[#allocation7 + $0x58] sm:$0xff]
    %v107 = vld [vmem:[#allocation7 + $0x60] sm:$0xff]
    %v108 = vld [vmem:[#allocation7 + $0x68] sm:$0xff]
    %v109 = vld [vmem:[#allocation7 + $0x70] sm:$0xff]
    %v110 = vld [vmem:[#allocation7 + $0x78] sm:$0xff]
    %v111 = vld [vmem:[#allocation8] sm:$0x1]
    %v113 = vlaneseq
    %v114 = vshrl.u32 %v113, 7
    %v115 = vsub.s32 0, %v114
    %v116 = vrot.slane %v111, %v115
    %118 = vmatprep.subr.mxu0 0.0
    %119 = vmatpush1.msra.mxu0 %v79
    %120 = vmatprep.subr.mxu0 0.0
    %121 = vmatpush1.msra.mxu0 %v80
    %122 = vmatprep.subr.mxu0 0.0
    %123 = vmatpush1.msra.mxu0 %v81
    %124 = vmatprep.subr.mxu0 0.0
    %125 = vmatpush1.msra.mxu0 %v82
    %126 = vmatprep.subr.mxu0 0.0
    %127 = vmatpush1.msra.mxu0 %v83
    %128 = vmatprep.subr.mxu0 0.0
    %129 = vmatpush1.msra.mxu0 %v84
    %130 = vmatprep.subr.mxu0 0.0
    %131 = vmatpush1.msra.mxu0 %v85
    %132 = vmatprep.subr.mxu0 0.0
    %133 = vmatpush1.msra.mxu0 %v86
    %134 = vmatprep.subr.mxu0 0.0
    %135 = vmatpush1.msra.mxu0 %v87
    %136 = vmatprep.subr.mxu0 0.0
    %137 = vmatpush1.msra.mxu0 %v88
    %138 = vmatprep.subr.mxu0 0.0
    %139 = vmatpush1.msra.mxu0 %v89
    %140 = vmatprep.subr.mxu0 0.0
    %141 = vmatpush1.msra.mxu0 %v90
    %142 = vmatprep.subr.mxu0 0.0
    %143 = vmatpush1.msra.mxu0 %v91
    %144 = vmatprep.subr.mxu0 0.0
    %145 = vmatpush1.msra.mxu0 %v92
    %146 = vmatprep.subr.mxu0 0.0
    %147 = vmatpush1.msra.mxu0 %v93
    %148 = vmatprep.subr.mxu0 0.0
    %149 = vmatpush1.msra.mxu0 %v94
    %150 = vmatprep.subr.mxu0 0.0
    %151 = vmatpush1.msra.mxu0 0.0
    %152 = vmatprep.subr.mxu0 0.0
    %153 = vmatpush1.msra.mxu0 0.0
    %154 = vmatprep.subr.mxu0 0.0
    %155 = vmatpush1.msra.mxu0 0.0
    %156 = vmatprep.subr.mxu0 0.0
    %157 = vmatpush1.msra.mxu0 0.0
    %158 = vmatprep.subr.mxu0 0.0
    %159 = vmatpush1.msra.mxu0 0.0
    %160 = vmatprep.subr.mxu0 0.0
    %161 = vmatpush1.msra.mxu0 0.0
    %162 = vmatprep.subr.mxu0 0.0
    %163 = vmatpush1.msra.mxu0 0.0
    %164 = vmatprep.subr.mxu0 0.0
    %165 = vmatpush1.msra.mxu0 0.0
    %166 = vmatprep.subr.mxu0 0.0
    %167 = vmatpush1.msra.mxu0 0.0
    %168 = vmatprep.subr.mxu0 0.0
    %169 = vmatpush1.msra.mxu0 0.0
    %170 = vmatprep.subr.mxu0 0.0
    %171 = vmatpush1.msra.mxu0 0.0
    %172 = vmatprep.subr.mxu0 0.0
    %173 = vmatpush1.msra.mxu0 0.0
    %174 = vmatprep.subr.mxu0 0.0
    %175 = vmatpush1.msra.mxu0 0.0
    %176 = vmatprep.subr.mxu0 0.0
    %177 = vmatpush1.msra.mxu0 0.0
    %178 = vmatprep.subr.mxu0 0.0
    %179 = vmatpush1.msra.mxu0 0.0
    %180 = vmatprep.subr.mxu0 0.0
    %181 = vmatpush1.msra.mxu0 0.0
    %182 = vmatprep.mubr.f32.mxu0 0.0
    %183 = vmatmul.mubr.f32.gmra.mrb[0].mxu0 %v71
    %v184 = vpop.f32.mrb[0].mxu0
    %v185 = vadd.f32 %v116, %v184
    %v186 = vpop.f32.mrb[0].mxu0
    %187 = vmatprep.mubr.f32.mxu0 0.0
    %188 = vmatmul.mubr.f32.gmra.mrb[0].mxu0 %v72
    %v189 = vpop.f32.mrb[0].mxu0
    %v190 = vadd.f32 %v116, %v189
    %v191 = vpop.f32.mrb[0].mxu0
    %192 = vmatprep.mubr.f32.mxu0 0.0
    %193 = vmatmul.mubr.f32.gmra.mrb[0].mxu0 %v73
    %v194 = vpop.f32.mrb[0].mxu0
    %v195 = vadd.f32 %v116, %v194
    %v196 = vpop.f32.mrb[0].mxu0
    %197 = vmatprep.mubr.f32.mxu0 0.0
    %198 = vmatmul.mubr.f32.gmra.mrb[0].mxu0 %v74
    %v199 = vpop.f32.mrb[0].mxu0
    %v200 = vadd.f32 %v116, %v199
    %v201 = vpop.f32.mrb[0].mxu0
    %202 = vmatprep.mubr.f32.mxu0 0.0
    %203 = vmatmul.mubr.f32.gmra.mrb[0].mxu0 %v75
    %v204 = vpop.f32.mrb[0].mxu0
    %v205 = vadd.f32 %v116, %v204
    %v206 = vpop.f32.mrb[0].mxu0
    %207 = vmatprep.mubr.f32.mxu0 0.0
    %208 = vmatmul.mubr.f32.gmra.mrb[0].mxu0 %v76
    %v209 = vpop.f32.mrb[0].mxu0
    %v210 = vadd.f32 %v116, %v209
    %v211 = vpop.f32.mrb[0].mxu0
    %212 = vmatprep.mubr.f32.mxu0 0.0
    %213 = vmatmul.mubr.f32.gmra.mrb[0].mxu0 %v77
    %v214 = vpop.f32.mrb[0].mxu0
    %v215 = vadd.f32 %v116, %v214
    %v216 = vpop.f32.mrb[0].mxu0
    %217 = vmatprep.mubr.f32.mxu0 0.0
    %218 = vmatmul.mubr.f32.gmra.mrb[0].mxu0 %v78
    %v219 = vpop.f32.mrb[0].mxu0
    %v220 = vadd.f32 %v116, %v219
    %v221 = vpop.f32.mrb[0].mxu0
    %222 = vdwg.mxu0
    %223 = vmatprep.subr.mxu0 0.0
    %224 = vmatpush1.msra.mxu0 %v95
    %225 = vmatprep.subr.mxu0 0.0
    %226 = vmatpush1.msra.mxu0 %v96
    %227 = vmatprep.subr.mxu0 0.0
    %228 = vmatpush1.msra.mxu0 %v97
    %229 = vmatprep.subr.mxu0 0.0
    %230 = vmatpush1.msra.mxu0 %v98
    %231 = vmatprep.subr.mxu0 0.0
    %232 = vmatpush1.msra.mxu0 %v99
    %233 = vmatprep.subr.mxu0 0.0
    %234 = vmatpush1.msra.mxu0 %v100
    %235 = vmatprep.subr.mxu0 0.0
    %236 = vmatpush1.msra.mxu0 %v101
    %237 = vmatprep.subr.mxu0 0.0
    %238 = vmatpush1.msra.mxu0 %v102
    %239 = vmatprep.subr.mxu0 0.0
    %240 = vmatpush1.msra.mxu0 %v103
    %241 = vmatprep.subr.mxu0 0.0
    %242 = vmatpush1.msra.mxu0 %v104
    %243 = vmatprep.subr.mxu0 0.0
    %244 = vmatpush1.msra.mxu0 %v105
    %245 = vmatprep.subr.mxu0 0.0
    %246 = vmatpush1.msra.mxu0 %v106
    %247 = vmatprep.subr.mxu0 0.0
    %248 = vmatpush1.msra.mxu0 %v107
    %249 = vmatprep.subr.mxu0 0.0
    %250 = vmatpush1.msra.mxu0 %v108
    %251 = vmatprep.subr.mxu0 0.0
    %252 = vmatpush1.msra.mxu0 %v109
    %253 = vmatprep.subr.mxu0 0.0
    %254 = vmatpush1.msra.mxu0 %v110
    %255 = vmatprep.subr.mxu0 0.0
    %256 = vmatpush1.msra.mxu0 0.0
    %257 = vmatprep.subr.mxu0 0.0
    %258 = vmatpush1.msra.mxu0 0.0
    %259 = vmatprep.subr.mxu0 0.0
    %260 = vmatpush1.msra.mxu0 0.0
    %261 = vmatprep.subr.mxu0 0.0
    %262 = vmatpush1.msra.mxu0 0.0
    %263 = vmatprep.subr.mxu0 0.0
    %264 = vmatpush1.msra.mxu0 0.0
    %265 = vmatprep.subr.mxu0 0.0
    %266 = vmatpush1.msra.mxu0 0.0
    %267 = vmatprep.subr.mxu0 0.0
    %268 = vmatpush1.msra.mxu0 0.0
    %269 = vmatprep.subr.mxu0 0.0
    %270 = vmatpush1.msra.mxu0 0.0
    %271 = vmatprep.subr.mxu0 0.0
    %272 = vmatpush1.msra.mxu0 0.0
    %273 = vmatprep.subr.mxu0 0.0
    %274 = vmatpush1.msra.mxu0 0.0
    %275 = vmatprep.subr.mxu0 0.0
    %276 = vmatpush1.msra.mxu0 0.0
    %277 = vmatprep.subr.mxu0 0.0
    %278 = vmatpush1.msra.mxu0 0.0
    %279 = vmatprep.subr.mxu0 0.0
    %280 = vmatpush1.msra.mxu0 0.0
    %281 = vmatprep.subr.mxu0 0.0
    %282 = vmatpush1.msra.mxu0 0.0
    %283 = vmatprep.subr.mxu0 0.0
    %284 = vmatpush1.msra.mxu0 0.0
    %285 = vmatprep.subr.mxu0 0.0
    %286 = vmatpush1.msra.mxu0 0.0
    %287 = vmatprep.mubr.f32.mxu0 0.0
    %288 = vmatmul.mubr.f32.gmra.mrb[0].mxu0 0.0
    %v289 = vpop.f32.mrb[0].mxu0
    %v290 = vadd.f32 0.0, %v289
    %v291 = vpop.f32.mrb[0].mxu0
    %292 = vdwg.mxu0
    %v293 = vadd.f32 %v185, %v290
    %v294 = vtanh.pop %v293
    %295 = vmatprep.subr.mxu0 0.0
    %296 = vmatpush1.msra.mxu0 %v95
    %297 = vmatprep.subr.mxu0 0.0
    %298 = vmatpush1.msra.mxu0 %v96
    %299 = vmatprep.subr.mxu0 0.0
    %300 = vmatpush1.msra.mxu0 %v97
    %301 = vmatprep.subr.mxu0 0.0
    %302 = vmatpush1.msra.mxu0 %v98
    %303 = vmatprep.subr.mxu0 0.0
    %304 = vmatpush1.msra.mxu0 %v99
    %305 = vmatprep.subr.mxu0 0.0
    %306 = vmatpush1.msra.mxu0 %v100
    %307 = vmatprep.subr.mxu0 0.0
    %308 = vmatpush1.msra.mxu0 %v101
    %309 = vmatprep.subr.mxu0 0.0
    %310 = vmatpush1.msra.mxu0 %v102
    %311 = vmatprep.subr.mxu0 0.0
    %312 = vmatpush1.msra.mxu0 %v103
    %313 = vmatprep.subr.mxu0 0.0
    %314 = vmatpush1.msra.mxu0 %v104
    %315 = vmatprep.subr.mxu0 0.0
    %316 = vmatpush1.msra.mxu0 %v105
    %317 = vmatprep.subr.mxu0 0.0
    %318 = vmatpush1.msra.mxu0 %v106
    %319 = vmatprep.subr.mxu0 0.0
    %320 = vmatpush1.msra.mxu0 %v107
    %321 = vmatprep.subr.mxu0 0.0
    %322 = vmatpush1.msra.mxu0 %v108
    %323 = vmatprep.subr.mxu0 0.0
    %324 = vmatpush1.msra.mxu0 %v109
    %325 = vmatprep.subr.mxu0 0.0
    %326 = vmatpush1.msra.mxu0 %v110
    %327 = vmatprep.subr.mxu0 0.0
    %328 = vmatpush1.msra.mxu0 0.0
    %329 = vmatprep.subr.mxu0 0.0
    %330 = vmatpush1.msra.mxu0 0.0
    %331 = vmatprep.subr.mxu0 0.0
    %332 = vmatpush1.msra.mxu0 0.0
    %333 = vmatprep.subr.mxu0 0.0
    %334 = vmatpush1.msra.mxu0 0.0
    %335 = vmatprep.subr.mxu0 0.0
    %336 = vmatpush1.msra.mxu0 0.0
    %337 = vmatprep.subr.mxu0 0.0
    %338 = vmatpush1.msra.mxu0 0.0
    %339 = vmatprep.subr.mxu0 0.0
    %340 = vmatpush1.msra.mxu0 0.0
    %341 = vmatprep.subr.mxu0 0.0
    %342 = vmatpush1.msra.mxu0 0.0
    %343 = vmatprep.subr.mxu0 0.0
    %344 = vmatpush1.msra.mxu0 0.0
    %345 = vmatprep.subr.mxu0 0.0
    %346 = vmatpush1.msra.mxu0 0.0
    %347 = vmatprep.subr.mxu0 0.0
    %348 = vmatpush1.msra.mxu0 0.0
    %349 = vmatprep.subr.mxu0 0.0
    %350 = vmatpush1.msra.mxu0 0.0
    %351 = vmatprep.subr.mxu0 0.0
    %352 = vmatpush1.msra.mxu0 0.0
    %353 = vmatprep.subr.mxu0 0.0
    %354 = vmatpush1.msra.mxu0 0.0
    %355 = vmatprep.subr.mxu0 0.0
    %356 = vmatpush1.msra.mxu0 0.0
    %357 = vmatprep.subr.mxu0 0.0
    %358 = vmatpush1.msra.mxu0 0.0
    %359 = vmatprep.mubr.f32.mxu0 0.0
    %360 = vmatmul.mubr.f32.gmra.mrb[0].mxu0 %v294
    %v361 = vpop.f32.mrb[0].mxu0
    %v362 = vadd.f32 0.0, %v361
    %v363 = vpop.f32.mrb[0].mxu0
    %364 = vdwg.mxu0
    %v365 = vadd.f32 %v190, %v362
    %v366 = vtanh.pop %v365
    %367 = vmatprep.subr.mxu0 0.0
    %368 = vmatpush1.msra.mxu0 %v95
    %369 = vmatprep.subr.mxu0 0.0
    %370 = vmatpush1.msra.mxu0 %v96
    %371 = vmatprep.subr.mxu0 0.0
    %372 = vmatpush1.msra.mxu0 %v97
    %373 = vmatprep.subr.mxu0 0.0
    %374 = vmatpush1.msra.mxu0 %v98
    %375 = vmatprep.subr.mxu0 0.0
    %376 = vmatpush1.msra.mxu0 %v99
    %377 = vmatprep.subr.mxu0 0.0
    %378 = vmatpush1.msra.mxu0 %v100
    %379 = vmatprep.subr.mxu0 0.0
    %380 = vmatpush1.msra.mxu0 %v101
    %381 = vmatprep.subr.mxu0 0.0
    %382 = vmatpush1.msra.mxu0 %v102
    %383 = vmatprep.subr.mxu0 0.0
    %384 = vmatpush1.msra.mxu0 %v103
    %385 = vmatprep.subr.mxu0 0.0
    %386 = vmatpush1.msra.mxu0 %v104
    %387 = vmatprep.subr.mxu0 0.0
    %388 = vmatpush1.msra.mxu0 %v105
    %389 = vmatprep.subr.mxu0 0.0
    %390 = vmatpush1.msra.mxu0 %v106
    %391 = vmatprep.subr.mxu0 0.0
    %392 = vmatpush1.msra.mxu0 %v107
    %393 = vmatprep.subr.mxu0 0.0
    %394 = vmatpush1.msra.mxu0 %v108
    %395 = vmatprep.subr.mxu0 0.0
    %396 = vmatpush1.msra.mxu0 %v109
    %397 = vmatprep.subr.mxu0 0.0
    %398 = vmatpush1.msra.mxu0 %v110
    %399 = vmatprep.subr.mxu0 0.0
    %400 = vmatpush1.msra.mxu0 0.0
    %401 = vmatprep.subr.mxu0 0.0
    %402 = vmatpush1.msra.mxu0 0.0
    %403 = vmatprep.subr.mxu0 0.0
    %404 = vmatpush1.msra.mxu0 0.0
    %405 = vmatprep.subr.mxu0 0.0
    %406 = vmatpush1.msra.mxu0 0.0
    %407 = vmatprep.subr.mxu0 0.0
    %408 = vmatpush1.msra.mxu0 0.0
    %409 = vmatprep.subr.mxu0 0.0
    %410 = vmatpush1.msra.mxu0 0.0
    %411 = vmatprep.subr.mxu0 0.0
    %412 = vmatpush1.msra.mxu0 0.0
    %413 = vmatprep.subr.mxu0 0.0
    %414 = vmatpush1.msra.mxu0 0.0
    %415 = vmatprep.subr.mxu0 0.0
    %416 = vmatpush1.msra.mxu0 0.0
    %417 = vmatprep.subr.mxu0 0.0
    %418 = vmatpush1.msra.mxu0 0.0
    %419 = vmatprep.subr.mxu0 0.0
    %420 = vmatpush1.msra.mxu0 0.0
    %421 = vmatprep.subr.mxu0 0.0
    %422 = vmatpush1.msra.mxu0 0.0
    %423 = vmatprep.subr.mxu0 0.0
    %424 = vmatpush1.msra.mxu0 0.0
    %425 = vmatprep.subr.mxu0 0.0
    %426 = vmatpush1.msra.mxu0 0.0
    %427 = vmatprep.subr.mxu0 0.0
    %428 = vmatpush1.msra.mxu0 0.0
    %429 = vmatprep.subr.mxu0 0.0
    %430 = vmatpush1.msra.mxu0 0.0
    %431 = vmatprep.mubr.f32.mxu0 0.0
    %432 = vmatmul.mubr.f32.gmra.mrb[0].mxu0 %v366
    %v433 = vpop.f32.mrb[0].mxu0
    %v434 = vadd.f32 0.0, %v433
    %v435 = vpop.f32.mrb[0].mxu0
    %436 = vdwg.mxu0
    %v437 = vadd.f32 %v195, %v434
    %v438 = vtanh.pop %v437
    %439 = vmatprep.subr.mxu0 0.0
    %440 = vmatpush1.msra.mxu0 %v95
    %441 = vmatprep.subr.mxu0 0.0
    %442 = vmatpush1.msra.mxu0 %v96
    %443 = vmatprep.subr.mxu0 0.0
    %444 = vmatpush1.msra.mxu0 %v97
    %445 = vmatprep.subr.mxu0 0.0
    %446 = vmatpush1.msra.mxu0 %v98
    %447 = vmatprep.subr.mxu0 0.0
    %448 = vmatpush1.msra.mxu0 %v99
    %449 = vmatprep.subr.mxu0 0.0
    %450 = vmatpush1.msra.mxu0 %v100
    %451 = vmatprep.subr.mxu0 0.0
    %452 = vmatpush1.msra.mxu0 %v101
    %453 = vmatprep.subr.mxu0 0.0
    %454 = vmatpush1.msra.mxu0 %v102
    %455 = vmatprep.subr.mxu0 0.0
    %456 = vmatpush1.msra.mxu0 %v103
    %457 = vmatprep.subr.mxu0 0.0
    %458 = vmatpush1.msra.mxu0 %v104
    %459 = vmatprep.subr.mxu0 0.0
    %460 = vmatpush1.msra.mxu0 %v105
    %461 = vmatprep.subr.mxu0 0.0
    %462 = vmatpush1.msra.mxu0 %v106
    %463 = vmatprep.subr.mxu0 0.0
    %464 = vmatpush1.msra.mxu0 %v107
    %465 = vmatprep.subr.mxu0 0.0
    %466 = vmatpush1.msra.mxu0 %v108
    %467 = vmatprep.subr.mxu0 0.0
    %468 = vmatpush1.msra.mxu0 %v109
    %469 = vmatprep.subr.mxu0 0.0
    %470 = vmatpush1.msra.mxu0 %v110
    %471 = vmatprep.subr.mxu0 0.0
    %472 = vmatpush1.msra.mxu0 0.0
    %473 = vmatprep.subr.mxu0 0.0
    %474 = vmatpush1.msra.mxu0 0.0
    %475 = vmatprep.subr.mxu0 0.0
    %476 = vmatpush1.msra.mxu0 0.0
    %477 = vmatprep.subr.mxu0 0.0
    %478 = vmatpush1.msra.mxu0 0.0
    %479 = vmatprep.subr.mxu0 0.0
    %480 = vmatpush1.msra.mxu0 0.0
    %481 = vmatprep.subr.mxu0 0.0
    %482 = vmatpush1.msra.mxu0 0.0
    %483 = vmatprep.subr.mxu0 0.0
    %484 = vmatpush1.msra.mxu0 0.0
    %485 = vmatprep.subr.mxu0 0.0
    %486 = vmatpush1.msra.mxu0 0.0
    %487 = vmatprep.subr.mxu0 0.0
    %488 = vmatpush1.msra.mxu0 0.0
    %489 = vmatprep.subr.mxu0 0.0
    %490 = vmatpush1.msra.mxu0 0.0
    %491 = vmatprep.subr.mxu0 0.0
    %492 = vmatpush1.msra.mxu0 0.0
    %493 = vmatprep.subr.mxu0 0.0
    %494 = vmatpush1.msra.mxu0 0.0
    %495 = vmatprep.subr.mxu0 0.0
    %496 = vmatpush1.msra.mxu0 0.0
    %497 = vmatprep.subr.mxu0 0.0
    %498 = vmatpush1.msra.mxu0 0.0
    %499 = vmatprep.subr.mxu0 0.0
    %500 = vmatpush1.msra.mxu0 0.0
    %501 = vmatprep.subr.mxu0 0.0
    %502 = vmatpush1.msra.mxu0 0.0
    %503 = vmatprep.mubr.f32.mxu0 0.0
    %504 = vmatmul.mubr.f32.gmra.mrb[0].mxu0 %v438
    %v505 = vpop.f32.mrb[0].mxu0
    %v506 = vadd.f32 0.0, %v505
    %v507 = vpop.f32.mrb[0].mxu0
    %508 = vdwg.mxu0
    %v509 = vadd.f32 %v200, %v506
    %v510 = vtanh.pop %v509
    %511 = vmatprep.subr.mxu0 0.0
    %512 = vmatpush1.msra.mxu0 %v95
    %513 = vmatprep.subr.mxu0 0.0
    %514 = vmatpush1.msra.mxu0 %v96
    %515 = vmatprep.subr.mxu0 0.0
    %516 = vmatpush1.msra.mxu0 %v97
    %517 = vmatprep.subr.mxu0 0.0
    %518 = vmatpush1.msra.mxu0 %v98
    %519 = vmatprep.subr.mxu0 0.0
    %520 = vmatpush1.msra.mxu0 %v99
    %521 = vmatprep.subr.mxu0 0.0
    %522 = vmatpush1.msra.mxu0 %v100
    %523 = vmatprep.subr.mxu0 0.0
    %524 = vmatpush1.msra.mxu0 %v101
    %525 = vmatprep.subr.mxu0 0.0
    %526 = vmatpush1.msra.mxu0 %v102
    %527 = vmatprep.subr.mxu0 0.0
    %528 = vmatpush1.msra.mxu0 %v103
    %529 = vmatprep.subr.mxu0 0.0
    %530 = vmatpush1.msra.mxu0 %v104
    %531 = vmatprep.subr.mxu0 0.0
    %532 = vmatpush1.msra.mxu0 %v105
    %533 = vmatprep.subr.mxu0 0.0
    %534 = vmatpush1.msra.mxu0 %v106
    %535 = vmatprep.subr.mxu0 0.0
    %536 = vmatpush1.msra.mxu0 %v107
    %537 = vmatprep.subr.mxu0 0.0
    %538 = vmatpush1.msra.mxu0 %v108
    %539 = vmatprep.subr.mxu0 0.0
    %540 = vmatpush1.msra.mxu0 %v109
    %541 = vmatprep.subr.mxu0 0.0
    %542 = vmatpush1.msra.mxu0 %v110
    %543 = vmatprep.subr.mxu0 0.0
    %544 = vmatpush1.msra.mxu0 0.0
    %545 = vmatprep.subr.mxu0 0.0
    %546 = vmatpush1.msra.mxu0 0.0
    %547 = vmatprep.subr.mxu0 0.0
    %548 = vmatpush1.msra.mxu0 0.0
    %549 = vmatprep.subr.mxu0 0.0
    %550 = vmatpush1.msra.mxu0 0.0
    %551 = vmatprep.subr.mxu0 0.0
    %552 = vmatpush1.msra.mxu0 0.0
    %553 = vmatprep.subr.mxu0 0.0
    %554 = vmatpush1.msra.mxu0 0.0
    %555 = vmatprep.subr.mxu0 0.0
    %556 = vmatpush1.msra.mxu0 0.0
    %557 = vmatprep.subr.mxu0 0.0
    %558 = vmatpush1.msra.mxu0 0.0
    %559 = vmatprep.subr.mxu0 0.0
    %560 = vmatpush1.msra.mxu0 0.0
    %561 = vmatprep.subr.mxu0 0.0
    %562 = vmatpush1.msra.mxu0 0.0
    %563 = vmatprep.subr.mxu0 0.0
    %564 = vmatpush1.msra.mxu0 0.0
    %565 = vmatprep.subr.mxu0 0.0
    %566 = vmatpush1.msra.mxu0 0.0
    %567 = vmatprep.subr.mxu0 0.0
    %568 = vmatpush1.msra.mxu0 0.0
    %569 = vmatprep.subr.mxu0 0.0
    %570 = vmatpush1.msra.mxu0 0.0
    %571 = vmatprep.subr.mxu0 0.0
    %572 = vmatpush1.msra.mxu0 0.0
    %573 = vmatprep.subr.mxu0 0.0
    %574 = vmatpush1.msra.mxu0 0.0
    %575 = vmatprep.mubr.f32.mxu0 0.0
    %576 = vmatmul.mubr.f32.gmra.mrb[0].mxu0 %v510
    %v577 = vpop.f32.mrb[0].mxu0
    %v578 = vadd.f32 0.0, %v577
    %v579 = vpop.f32.mrb[0].mxu0
    %580 = vdwg.mxu0
    %v581 = vadd.f32 %v205, %v578
    %v582 = vtanh.pop %v581
    %583 = vmatprep.subr.mxu0 0.0
    %584 = vmatpush1.msra.mxu0 %v95
    %585 = vmatprep.subr.mxu0 0.0
    %586 = vmatpush1.msra.mxu0 %v96
    %587 = vmatprep.subr.mxu0 0.0
    %588 = vmatpush1.msra.mxu0 %v97
    %589 = vmatprep.subr.mxu0 0.0
    %590 = vmatpush1.msra.mxu0 %v98
    %591 = vmatprep.subr.mxu0 0.0
    %592 = vmatpush1.msra.mxu0 %v99
    %593 = vmatprep.subr.mxu0 0.0
    %594 = vmatpush1.msra.mxu0 %v100
    %595 = vmatprep.subr.mxu0 0.0
    %596 = vmatpush1.msra.mxu0 %v101
    %597 = vmatprep.subr.mxu0 0.0
    %598 = vmatpush1.msra.mxu0 %v102
    %599 = vmatprep.subr.mxu0 0.0
    %600 = vmatpush1.msra.mxu0 %v103
    %601 = vmatprep.subr.mxu0 0.0
    %602 = vmatpush1.msra.mxu0 %v104
    %603 = vmatprep.subr.mxu0 0.0
    %604 = vmatpush1.msra.mxu0 %v105
    %605 = vmatprep.subr.mxu0 0.0
    %606 = vmatpush1.msra.mxu0 %v106
    %607 = vmatprep.subr.mxu0 0.0
    %608 = vmatpush1.msra.mxu0 %v107
    %609 = vmatprep.subr.mxu0 0.0
    %610 = vmatpush1.msra.mxu0 %v108
    %611 = vmatprep.subr.mxu0 0.0
    %612 = vmatpush1.msra.mxu0 %v109
    %613 = vmatprep.subr.mxu0 0.0
    %614 = vmatpush1.msra.mxu0 %v110
    %615 = vmatprep.subr.mxu0 0.0
    %616 = vmatpush1.msra.mxu0 0.0
    %617 = vmatprep.subr.mxu0 0.0
    %618 = vmatpush1.msra.mxu0 0.0
    %619 = vmatprep.subr.mxu0 0.0
    %620 = vmatpush1.msra.mxu0 0.0
    %621 = vmatprep.subr.mxu0 0.0
    %622 = vmatpush1.msra.mxu0 0.0
    %623 = vmatprep.subr.mxu0 0.0
    %624 = vmatpush1.msra.mxu0 0.0
    %625 = vmatprep.subr.mxu0 0.0
    %626 = vmatpush1.msra.mxu0 0.0
    %627 = vmatprep.subr.mxu0 0.0
    %628 = vmatpush1.msra.mxu0 0.0
    %629 = vmatprep.subr.mxu0 0.0
    %630 = vmatpush1.msra.mxu0 0.0
    %631 = vmatprep.subr.mxu0 0.0
    %632 = vmatpush1.msra.mxu0 0.0
    %633 = vmatprep.subr.mxu0 0.0
    %634 = vmatpush1.msra.mxu0 0.0
    %635 = vmatprep.subr.mxu0 0.0
    %636 = vmatpush1.msra.mxu0 0.0
    %637 = vmatprep.subr.mxu0 0.0
    %638 = vmatpush1.msra.mxu0 0.0
    %639 = vmatprep.subr.mxu0 0.0
    %640 = vmatpush1.msra.mxu0 0.0
    %641 = vmatprep.subr.mxu0 0.0
    %642 = vmatpush1.msra.mxu0 0.0
    %643 = vmatprep.subr.mxu0 0.0
    %644 = vmatpush1.msra.mxu0 0.0
    %645 = vmatprep.subr.mxu0 0.0
    %646 = vmatpush1.msra.mxu0 0.0
    %647 = vmatprep.mubr.f32.mxu0 0.0
    %648 = vmatmul.mubr.f32.gmra.mrb[0].mxu0 %v582
    %v649 = vpop.f32.mrb[0].mxu0
    %v650 = vadd.f32 0.0, %v649
    %v651 = vpop.f32.mrb[0].mxu0
    %652 = vdwg.mxu0
    %v653 = vadd.f32 %v210, %v650
    %v654 = vtanh.pop %v653
    %655 = vmatprep.subr.mxu0 0.0
    %656 = vmatpush1.msra.mxu0 %v95
    %657 = vmatprep.subr.mxu0 0.0
    %658 = vmatpush1.msra.mxu0 %v96
    %659 = vmatprep.subr.mxu0 0.0
    %660 = vmatpush1.msra.mxu0 %v97
    %661 = vmatprep.subr.mxu0 0.0
    %662 = vmatpush1.msra.mxu0 %v98
    %663 = vmatprep.subr.mxu0 0.0
    %664 = vmatpush1.msra.mxu0 %v99
    %665 = vmatprep.subr.mxu0 0.0
    %666 = vmatpush1.msra.mxu0 %v100
    %667 = vmatprep.subr.mxu0 0.0
    %668 = vmatpush1.msra.mxu0 %v101
    %669 = vmatprep.subr.mxu0 0.0
    %670 = vmatpush1.msra.mxu0 %v102
    %671 = vmatprep.subr.mxu0 0.0
    %672 = vmatpush1.msra.mxu0 %v103
    %673 = vmatprep.subr.mxu0 0.0
    %674 = vmatpush1.msra.mxu0 %v104
    %675 = vmatprep.subr.mxu0 0.0
    %676 = vmatpush1.msra.mxu0 %v105
    %677 = vmatprep.subr.mxu0 0.0
    %678 = vmatpush1.msra.mxu0 %v106
    %679 = vmatprep.subr.mxu0 0.0
    %680 = vmatpush1.msra.mxu0 %v107
    %681 = vmatprep.subr.mxu0 0.0
    %682 = vmatpush1.msra.mxu0 %v108
    %683 = vmatprep.subr.mxu0 0.0
    %684 = vmatpush1.msra.mxu0 %v109
    %685 = vmatprep.subr.mxu0 0.0
    %686 = vmatpush1.msra.mxu0 %v110
    %687 = vmatprep.subr.mxu0 0.0
    %688 = vmatpush1.msra.mxu0 0.0
    %689 = vmatprep.subr.mxu0 0.0
    %690 = vmatpush1.msra.mxu0 0.0
    %691 = vmatprep.subr.mxu0 0.0
    %692 = vmatpush1.msra.mxu0 0.0
    %693 = vmatprep.subr.mxu0 0.0
    %694 = vmatpush1.msra.mxu0 0.0
    %695 = vmatprep.subr.mxu0 0.0
    %696 = vmatpush1.msra.mxu0 0.0
    %697 = vmatprep.subr.mxu0 0.0
    %698 = vmatpush1.msra.mxu0 0.0
    %699 = vmatprep.subr.mxu0 0.0
    %700 = vmatpush1.msra.mxu0 0.0
    %701 = vmatprep.subr.mxu0 0.0
    %702 = vmatpush1.msra.mxu0 0.0
    %703 = vmatprep.subr.mxu0 0.0
    %704 = vmatpush1.msra.mxu0 0.0
    %705 = vmatprep.subr.mxu0 0.0
    %706 = vmatpush1.msra.mxu0 0.0
    %707 = vmatprep.subr.mxu0 0.0
    %708 = vmatpush1.msra.mxu0 0.0
    %709 = vmatprep.subr.mxu0 0.0
    %710 = vmatpush1.msra.mxu0 0.0
    %711 = vmatprep.subr.mxu0 0.0
    %712 = vmatpush1.msra.mxu0 0.0
    %713 = vmatprep.subr.mxu0 0.0
    %714 = vmatpush1.msra.mxu0 0.0
    %715 = vmatprep.subr.mxu0 0.0
    %716 = vmatpush1.msra.mxu0 0.0
    %717 = vmatprep.subr.mxu0 0.0
    %718 = vmatpush1.msra.mxu0 0.0
    %719 = vmatprep.mubr.f32.mxu0 0.0
    %720 = vmatmul.mubr.f32.gmra.mrb[0].mxu0 %v654
    %v721 = vpop.f32.mrb[0].mxu0
    %v722 = vadd.f32 0.0, %v721
    %v723 = vpop.f32.mrb[0].mxu0
    %724 = vdwg.mxu0
    %v725 = vadd.f32 %v215, %v722
    %v726 = vtanh.pop %v725
    %727 = vmatprep.subr.mxu0 0.0
    %728 = vmatpush1.msra.mxu0 %v95
    %729 = vmatprep.subr.mxu0 0.0
    %730 = vmatpush1.msra.mxu0 %v96
    %731 = vmatprep.subr.mxu0 0.0
    %732 = vmatpush1.msra.mxu0 %v97
    %733 = vmatprep.subr.mxu0 0.0
    %734 = vmatpush1.msra.mxu0 %v98
    %735 = vmatprep.subr.mxu0 0.0
    %736 = vmatpush1.msra.mxu0 %v99
    %737 = vmatprep.subr.mxu0 0.0
    %738 = vmatpush1.msra.mxu0 %v100
    %739 = vmatprep.subr.mxu0 0.0
    %740 = vmatpush1.msra.mxu0 %v101
    %741 = vmatprep.subr.mxu0 0.0
    %742 = vmatpush1.msra.mxu0 %v102
    %743 = vmatprep.subr.mxu0 0.0
    %744 = vmatpush1.msra.mxu0 %v103
    %745 = vmatprep.subr.mxu0 0.0
    %746 = vmatpush1.msra.mxu0 %v104
    %747 = vmatprep.subr.mxu0 0.0
    %748 = vmatpush1.msra.mxu0 %v105
    %749 = vmatprep.subr.mxu0 0.0
    %750 = vmatpush1.msra.mxu0 %v106
    %751 = vmatprep.subr.mxu0 0.0
    %752 = vmatpush1.msra.mxu0 %v107
    %753 = vmatprep.subr.mxu0 0.0
    %754 = vmatpush1.msra.mxu0 %v108
    %755 = vmatprep.subr.mxu0 0.0
    %756 = vmatpush1.msra.mxu0 %v109
    %757 = vmatprep.subr.mxu0 0.0
    %758 = vmatpush1.msra.mxu0 %v110
    %759 = vmatprep.subr.mxu0 0.0
    %760 = vmatpush1.msra.mxu0 0.0
    %761 = vmatprep.subr.mxu0 0.0
    %762 = vmatpush1.msra.mxu0 0.0
    %763 = vmatprep.subr.mxu0 0.0
    %764 = vmatpush1.msra.mxu0 0.0
    %765 = vmatprep.subr.mxu0 0.0
    %766 = vmatpush1.msra.mxu0 0.0
    %767 = vmatprep.subr.mxu0 0.0
    %768 = vmatpush1.msra.mxu0 0.0
    %769 = vmatprep.subr.mxu0 0.0
    %770 = vmatpush1.msra.mxu0 0.0
    %771 = vmatprep.subr.mxu0 0.0
    %772 = vmatpush1.msra.mxu0 0.0
    %773 = vmatprep.subr.mxu0 0.0
    %774 = vmatpush1.msra.mxu0 0.0
    %775 = vmatprep.subr.mxu0 0.0
    %776 = vmatpush1.msra.mxu0 0.0
    %777 = vmatprep.subr.mxu0 0.0
    %778 = vmatpush1.msra.mxu0 0.0
    %779 = vmatprep.subr.mxu0 0.0
    %780 = vmatpush1.msra.mxu0 0.0
    %781 = vmatprep.subr.mxu0 0.0
    %782 = vmatpush1.msra.mxu0 0.0
    %783 = vmatprep.subr.mxu0 0.0
    %784 = vmatpush1.msra.mxu0 0.0
    %785 = vmatprep.subr.mxu0 0.0
    %786 = vmatpush1.msra.mxu0 0.0
    %787 = vmatprep.subr.mxu0 0.0
    %788 = vmatpush1.msra.mxu0 0.0
    %789 = vmatprep.subr.mxu0 0.0
    %790 = vmatpush1.msra.mxu0 0.0
    %791 = vmatprep.mubr.f32.mxu0 0.0
    %792 = vmatmul.mubr.f32.gmra.mrb[0].mxu0 %v726
    %v793 = vpop.f32.mrb[0].mxu0
    %v794 = vadd.f32 0.0, %v793
    %v795 = vpop.f32.mrb[0].mxu0
    %796 = vdwg.mxu0
    %v797 = vadd.f32 %v220, %v794
    %v798 = vtanh.pop %v797
    %799 = vst [vmem:[#allocation10] sm:$0xff] %v798
    // Predicated region
    $region34: #{tpu_custom_call.1} parent=1 // pred_check
      _
    $region35: #{tpu_custom_call.1} parent=1 // pred_check_branch
      %801 = sbr.rel (0) target = $region37
    $region36: #{tpu_custom_call.1} parent=1 // pred_region
      %s803 = ssub.s32 128, 128
      %804 = vsyncadd [#allocation4], %s803
      %s806 = sshll.u32 [#allocation10], 4
      %s807 = int_to_ptr.vmem [resolvable:$true] %s806
      %809 = dma.vmem_to_hbm [thread:$0]  %s807, 128, %s4, [#allocation4]
    $region37: #{tpu_custom_call.1} parent=1 // pred_fallthru
      _
    // Predicated region
    $region38: #{tpu_custom_call.1} parent=1 // pred_check
      _
    $region39: #{tpu_custom_call.1} parent=1 // pred_check_branch
      %811 = sbr.rel (0) target = $region41
    $region40: #{tpu_custom_call.1} parent=1 // pred_region
      %812 = dma.done [#allocation4], 128
    $region41: #{tpu_custom_call.1} parent=1 // pred_fallthru
      _
    %813 = vsyncpa [#allocation3], 1
    %814 = vsyncpa [#allocation6], 1
    %815 = vsyncpa [#allocation9], 1
    %816 = vsyncpa [#allocation4], 1

</llo_original>
